<compile_context>
chip_gen: v6e
topology: v6e:2x2x1
jax: 0.10.0
libtpu: 0.0.40
codegen_flags: <defaults>
</compile_context>

<pallas_src>
import functools
import math

import jax
import jax.numpy as jnp
from jax import lax
from jax.experimental import pallas as pl
from jax.experimental.pallas import tpu as pltpu


# ----------------------------- chip-aware knobs -------------------------------

@functools.lru_cache(maxsize=None)
def _vmem_limit_bytes():
    # ~75% of physical VMEM, capped at 96 MiB: ~96 MiB on v5e/v6e (128 MiB phys),
    # ~48 MiB on v7x (64 MiB phys).
    try:
        cap = pltpu.get_tpu_info().vmem_capacity_bytes
    except Exception:
        cap = 64 << 20
    return int(min(cap * 3 // 4, 96 << 20))


def _default_tm():
    return 512 if _vmem_limit_bytes() >= (64 << 20) else 256


def _compiler_params(n_grid_axes):
    return pltpu.CompilerParams(
        dimension_semantics=("parallel",) * n_grid_axes,
        vmem_limit_bytes=_vmem_limit_bytes())


def _pick_tile(n, target, quantum):
    """Largest divisor of n that is <= target and a multiple of quantum, else n."""
    if n <= target:
        return n
    start = target - (target % quantum)
    for t in range(start, 0, -quantum):
        if n % t == 0:
            return t
    return n


def _const_spec(shape):
    """Grid-invariant block: same block every step -> single-buffered in VMEM."""
    index_map = lambda *_: (0,) * len(shape)
    try:
        return pl.BlockSpec(shape, index_map, pipeline_mode=pl.Buffered(1))
    except Exception:  # older jax without pipeline_mode / Buffered
        return pl.BlockSpec(shape, index_map)


# ----------------------------- Row/col-tiled linear ---------------------------

def _linear_kernel(x_ref, w_ref, b_ref, o_ref):
    # y = x @ W + b  (W stored as [Din, Dout] = torch weight.T); bf16 MXU, f32 acc.
    acc = jnp.dot(x_ref[...], w_ref[...], preferred_element_type=jnp.float32)
    o_ref[...] = (acc + b_ref[...]).astype(o_ref.dtype)


def linear(x2d, w, b, *, out_dtype=jnp.bfloat16, tm=None, tn_target=512):
    """x2d: [N, Din] bf16, w: [Din, Dout] bf16, b: [1, Dout] f32 -> [N, Dout]."""
    N, Din = x2d.shape
    Dout = w.shape[1]
    if tm is None:
        tm = _default_tm()
    tm = _pick_tile(N, tm, 8)
    tn = _pick_tile(Dout, tn_target, 128)
    grid = (N // tm, Dout // tn)

    if Dout == tn:   # single column tile -> weight block is grid-invariant
        w_spec = _const_spec((Din, tn))
        b_spec = _const_spec((1, tn))
    else:            # stream vocab/FFN tiles of the weight
        w_spec = pl.BlockSpec((Din, tn), lambda i, j: (0, j))
        b_spec = pl.BlockSpec((1, tn), lambda i, j: (0, j))

    return pl.pallas_call(
        _linear_kernel,
        out_shape=jax.ShapeDtypeStruct((N, Dout), out_dtype),
        grid=grid,
        in_specs=[pl.BlockSpec((tm, Din), lambda i, j: (i, 0)), w_spec, b_spec],
        out_specs=pl.BlockSpec((tm, tn), lambda i, j: (i, j)),
        compiler_params=_compiler_params(2),
    )(x2d, w, b)


# ------------- Fused attention + output-proj + residual + LayerNorm -----------

def _attn_block_kernel(*refs, n_heads, scale_inv, causal, has_mask, return_attn):
    it = iter(refs)
    q_ref = next(it)
    k_ref = next(it)
    v_ref = next(it)
    m_ref = next(it) if has_mask else None
    wo_ref = next(it)
    bo_ref = next(it)
    res_ref = next(it)
    g_ref = next(it)
    beta_ref = next(it)
    o_ref = next(it)
    a_ref = next(it) if return_attn else None
    acc_ref = next(it)

    q = q_ref[0]                       # [tq, D] bf16
    k = k_ref[0]                       # [Tk, D] bf16
    v = v_ref[0]                       # [Tk, D] bf16
    wo = wo_ref[...]                   # [D, D]  bf16
    tq, D = q.shape
    Tk = k.shape[0]
    Dh = D // n_heads
    neg = jnp.float32(-1e10)

    keep = None
    if causal:
        # causal mask generated in-kernel (no [B,T,T] HBM mask traffic)
        q_off = pl.program_id(1) * tq
        row = lax.broadcasted_iota(jnp.int32, (tq, Tk), 0) + q_off
        col = lax.broadcasted_iota(jnp.int32, (tq, Tk), 1)
        keep = row >= col
    if has_mask:
        pad_keep = m_ref[0] != 0       # [Tm, Tk], Tm in {1, tq}; broadcasts over rows
        keep = pad_keep if keep is None else jnp.logical_and(keep, pad_keep)

    acc_ref[...] = jnp.zeros_like(acc_ref)
    for h in range(n_heads):           # static unroll; n_heads is small
        lo = h * Dh
        qh = q[:, lo:lo + Dh]
        kh = k[:, lo:lo + Dh]
        vh = v[:, lo:lo + Dh]
        # QK^T via dot_general (contract last dims, no in-kernel transpose), bf16 MXU.
        e = lax.dot_general(qh, kh, (((1,), (1,)), ((), ())),
                            preferred_element_type=jnp.float32) * scale_inv
        if keep is not None:
            e = jnp.where(keep, e, neg)
        e = e - jnp.max(e, axis=-1, keepdims=True)
        p = jnp.exp(e)
        p = p * pl.reciprocal(jnp.sum(p, axis=-1, keepdims=True), approx=False)
        if a_ref is not None:
            a_ref[0, h] = p
        ctx = jnp.dot(p.astype(jnp.bfloat16), vh,
                      preferred_element_type=jnp.float32)            # [tq, Dh]
        # Fold output projection per head: concat(ctx) @ Wo == sum_h ctx_h @ Wo[h*Dh:...]
        acc_ref[...] += jnp.dot(ctx.astype(jnp.bfloat16), wo[lo:lo + Dh, :],
                                preferred_element_type=jnp.float32)

    # residual add + LayerNorm epilogue (dropout = identity), f32 statistics
    s = acc_ref[...] + bo_ref[...] + res_ref[0].astype(jnp.float32)
    mean = jnp.mean(s, axis=-1, keepdims=True)
    var = jnp.mean(jnp.square(s - mean), axis=-1, keepdims=True)
    norm = (s - mean) * lax.rsqrt(var + 1e-5)
    o_ref[0] = (norm * g_ref[...] + beta_ref[...]).astype(o_ref.dtype)


def attention_block(q, k, v, wo, bo, res3, gamma, beta, *, n_heads, scale,
                    mask3=None, causal=False, return_attn=False, tq_target=256):
    """Fused MHA sub-layer: LayerNorm(res + fc_o(softmax(QK^T/s [mask]) V)).

    q/k/v are (array, col_block) pairs: the array may be a fused [.,.,{1,2,3}*D]
    projection output; col_block selects which D-wide column block holds Q/K/V, so
    the fused tensor is never split in HBM.  mask3: optional [B, 1|Tq, Tk] int8.
    res3: [B, Tq, D] residual.  Returns (bf16 output, attn f32 | None).
    """
    q_arr, q_col = q
    k_arr, k_col = k
    v_arr, v_col = v
    B, Tq, D = res3.shape
    Tk = k_arr.shape[1]
    tq = _pick_tile(Tq, tq_target, 8)
    grid = (B, Tq // tq)

    in_specs = [
        pl.BlockSpec((1, tq, D), lambda b, i, c=q_col: (b, i, c)),   # Q columns
        pl.BlockSpec((1, Tk, D), lambda b, i, c=k_col: (b, 0, c)),   # K columns
        pl.BlockSpec((1, Tk, D), lambda b, i, c=v_col: (b, 0, c)),   # V columns
    ]
    inputs = [q_arr, k_arr, v_arr]
    if mask3 is not None:
        Tm = mask3.shape[1]
        if Tm == 1:
            in_specs.append(pl.BlockSpec((1, 1, Tk), lambda b, i: (b, 0, 0)))
        else:
            in_specs.append(pl.BlockSpec((1, tq, Tk), lambda b, i: (b, i, 0)))
        inputs.append(mask3)
    in_specs += [
        _const_spec((D, D)),                                   # Wo (bf16)
        _const_spec((1, D)),                                   # bo (f32)
        pl.BlockSpec((1, tq, D), lambda b, i: (b, i, 0)),      # residual
        _const_spec((1, D)),                                   # gamma
        _const_spec((1, D)),                                   # beta
    ]
    inputs += [wo, bo, res3, gamma, beta]

    kern = functools.partial(_attn_block_kernel, n_heads=n_heads,
                             scale_inv=1.0 / scale, causal=causal,
                             has_mask=mask3 is not None, return_attn=return_attn)
    scratch = [pltpu.VMEM((tq, D), jnp.float32)]               # per-tile accumulator

    out_shape = jax.ShapeDtypeStruct((B, Tq, D), jnp.bfloat16)
    out_specs = pl.BlockSpec((1, tq, D), lambda b, i: (b, i, 0))
    if return_attn:
        out_shape = (out_shape,
                     jax.ShapeDtypeStruct((B, n_heads, Tq, Tk), jnp.float32))
        out_specs = (out_specs,
                     pl.BlockSpec((1, n_heads, tq, Tk), lambda b, i: (b, 0, i, 0)))

    res = pl.pallas_call(
        kern, out_shape=out_shape, grid=grid,
        in_specs=in_specs, out_specs=out_specs, scratch_shapes=scratch,
        compiler_params=_compiler_params(2),
    )(*inputs)
    if return_attn:
        return res
    return res, None


# ------------- Fused FFN + residual + LayerNorm (row-tiled) -------------------

def _ffn_block_kernel(x_ref, w1_ref, b1_ref, w2_ref, b2_ref, g_ref, beta_ref, o_ref):
    x = x_ref[...]                                                    # [tm, D] bf16
    h = jnp.dot(x, w1_ref[...], preferred_element_type=jnp.float32) + b1_ref[...]
    h = jnp.maximum(h, 0.0)                                           # relu (dropout=id)
    y = jnp.dot(h.astype(jnp.bfloat16), w2_ref[...],
                preferred_element_type=jnp.float32) + b2_ref[...]
    s = y + x.astype(jnp.float32)                                     # residual
    mean = jnp.mean(s, axis=-1, keepdims=True)
    var = jnp.mean(jnp.square(s - mean), axis=-1, keepdims=True)
    norm = (s - mean) * lax.rsqrt(var + 1e-5)
    o_ref[...] = (norm * g_ref[...] + beta_ref[...]).astype(o_ref.dtype)


def ffn_block(x2d, w1, b1, w2, b2, g, beta, *, tm=None):
    """LayerNorm(x + W2 @ relu(W1 @ x)) fused, row-tiled; bf16 in/out, f32 inside."""
    N, D = x2d.shape
    Pf = w1.shape[1]
    if tm is None:
        tm = _default_tm()
    tm = _pick_tile(N, tm, 8)
    return pl.pallas_call(
        _ffn_block_kernel,
        out_shape=jax.ShapeDtypeStruct((N, D), jnp.bfloat16),
        grid=(N // tm,),
        in_specs=[pl.BlockSpec((tm, D), lambda i: (i, 0)),
                  _const_spec((D, Pf)), _const_spec((1, Pf)),
                  _const_spec((Pf, D)), _const_spec((1, D)),
                  _const_spec((1, D)), _const_spec((1, D))],
        out_specs=pl.BlockSpec((tm, D), lambda i: (i, 0)),
        compiler_params=_compiler_params(1),
    )(x2d, w1, b1, w2, b2, g, beta)


# ----------------------------- Model composition ------------------------------

def decoder_forward(params, trg_ids, enc_src, trg_mask, src_mask, *,
                    n_heads, hid_dim, causal_trg_mask=True):
    """Matches Decoder.forward (eval mode).  When causal_trg_mask=True the target
    mask is assumed to be the standard lower-triangular causal mask (as built by the
    usual Seq2Seq wrapper / the demo) and is regenerated in-kernel via iota; pass
    False to honor an arbitrary trg_mask tensor."""
    B, T = trg_ids.shape
    Ts = enc_src.shape[1]
    D = hid_dim
    Dh = D // n_heads
    scale = math.sqrt(Dh)

    # TODO(synk): embedding gathers done in plain JAX (no clean Pallas gather for tiny vocab).
    pos = jnp.arange(T, dtype=jnp.int32)
    tok = params['tok_emb'][trg_ids]                       # [B, T, D] f32
    posb = params['pos_emb'][pos][None, :, :]              # [1, T, D] f32
    x = (tok * math.sqrt(D) + posb).astype(jnp.bfloat16)   # dropout -> identity (eval)

    N, M = B * T, B * Ts
    x2 = x.reshape(N, D)
    enc2 = enc_src.astype(jnp.bfloat16).reshape(M, D)

    # Masks: head axis dropped, int8 (no f32 / head-broadcast HBM traffic).
    trg_m = None if causal_trg_mask else (trg_mask[:, 0] != 0).astype(jnp.int8)
    src_m = (src_mask[:, 0] != 0).astype(jnp.int8)          # [B, 1, Ts]

    fuse = (D % 128 == 0)   # lane-aligned column blocks of the fused projections
    n_layers = len(params['layers'])
    attention = None
    for li, layer in enumerate(params['layers']):
        x3 = x2.reshape(B, T, D)

        # ---- self-attention sub-layer --------------------------------------
        qkv = linear(x2, *layer['self']['qkv'])             # fused QKV: [N, 3D] bf16
        if fuse:
            qkv3 = qkv.reshape(B, T, 3 * D)
            q_in, k_in, v_in = (qkv3, 0), (qkv3, 1), (qkv3, 2)
        else:
            # TODO(synk): D % 128 != 0 -> column blocks would be lane-misaligned; fall back.
            q_in = (qkv[:, :D].reshape(B, T, D), 0)
            k_in = (qkv[:, D:2 * D].reshape(B, T, D), 0)
            v_in = (qkv[:, 2 * D:].reshape(B, T, D), 0)
        xo, _ = attention_block(q_in, k_in, v_in, *layer['self']['o'], x3,
                                *layer['ln1'], n_heads=n_heads, scale=scale,
                                mask3=trg_m, causal=causal_trg_mask)
        x2 = xo.reshape(N, D)

        # ---- cross-attention sub-layer -------------------------------------
        q = linear(x2, *layer['cross']['q']).reshape(B, T, D)
        kv = linear(enc2, *layer['cross']['kv'])            # fused K+V: [M, 2D] bf16
        if fuse:
            kv3 = kv.reshape(B, Ts, 2 * D)
            k_in, v_in = (kv3, 0), (kv3, 1)
        else:
            k_in = (kv[:, :D].reshape(B, Ts, D), 0)
            v_in = (kv[:, D:].reshape(B, Ts, D), 0)
        need_attn = (li == n_layers - 1)                    # only the returned one
        xo, attn = attention_block((q, 0), k_in, v_in, *layer['cross']['o'],
                                   x2.reshape(B, T, D), *layer['ln2'],
                                   n_heads=n_heads, scale=scale,
                                   mask3=src_m, causal=False, return_attn=need_attn)
        if attn is not None:
            attention = attn
        x2 = xo.reshape(N, D)

        # ---- position-wise FFN sub-layer -----------------------------------
        x2 = ffn_block(x2, *layer['ffn'], *layer['ln3'])

    # ---- final projection (vocab padded to a 128 multiple at init, tiled over cols)
    w_fc, b_fc, V = params['fc_out']
    logits = linear(x2, w_fc, b_fc, out_dtype=jnp.float32)[:, :V]
    return logits.reshape(B, T, V), attention


# ----------------------------- Parameter init ---------------------------------

def _dense(key, din, dout):
    k1, k2 = jax.random.split(key)
    w = (jax.random.normal(k1, (din, dout), jnp.float32) * 0.02).astype(jnp.bfloat16)
    b = jax.random.normal(k2, (1, dout), jnp.float32) * 0.02
    return (w, b)


def init_params(key, output_dim, hid_dim, n_layers, n_heads, pf_dim, max_length):
    keys = jax.random.split(key, 3 + n_layers)
    w_fc, b_fc = _dense(keys[2], hid_dim, output_dim)
    pad = (-output_dim) % 128                         # pad hoisted out of the forward
    if pad:
        w_fc = jnp.pad(w_fc, ((0, 0), (0, pad)))
        b_fc = jnp.pad(b_fc, ((0, 0), (0, pad)))
    params = {
        'tok_emb': jax.random.normal(keys[0], (output_dim, hid_dim), jnp.float32) * 0.02,
        'pos_emb': jax.random.normal(keys[1], (max_length, hid_dim), jnp.float32) * 0.02,
        'fc_out': (w_fc, b_fc, output_dim),
        'layers': [],
    }
    ones = jnp.ones((1, hid_dim), jnp.float32)
    zeros = jnp.zeros((1, hid_dim), jnp.float32)
    for li in range(n_layers):
        lk = jax.random.split(keys[3 + li], 7)
        w1, b1 = _dense(lk[5], hid_dim, pf_dim)
        w2, b2 = _dense(lk[6], pf_dim, hid_dim)
        params['layers'].append({
            'self': {'qkv': _dense(lk[0], hid_dim, 3 * hid_dim),
                     'o': _dense(lk[1], hid_dim, hid_dim)},
            'cross': {'q': _dense(lk[2], hid_dim, hid_dim),
                      'kv': _dense(lk[3], hid_dim, 2 * hid_dim),
                      'o': _dense(lk[4], hid_dim, hid_dim)},
            'ffn': (w1, b1, w2, b2),
            'ln1': (ones, zeros),
            'ln2': (ones, zeros),
            'ln3': (ones, zeros),
        })
    return params


# ----------------------------------- Main --------------------------------------

if __name__ == "__main__":
    B, T_trg, T_src = 2, 8, 10
    # hid_dim = 128 keeps the fused-QKV column blocks lane-aligned (D % 128 == 0).
    hid_dim, n_heads, pf_dim, n_layers = 128, 4, 256, 2
    output_dim, max_length = 50, 100

    key = jax.random.PRNGKey(0)
    kp, k1, k2 = jax.random.split(key, 3)

    params = init_params(kp, output_dim, hid_dim, n_layers, n_heads, pf_dim, max_length)

    trg = jax.random.randint(k1, (B, T_trg), 0, output_dim, dtype=jnp.int32)
    enc_src = jax.random.normal(k2, (B, T_src, hid_dim), jnp.float32)

    # causal target mask [B, 1, T_trg, T_trg], all-ones source mask [B, 1, 1, T_src]
    trg_mask = jnp.broadcast_to(
        jnp.tril(jnp.ones((T_trg, T_trg), jnp.float32))[None, None],
        (B, 1, T_trg, T_trg))
    src_mask = jnp.ones((B, 1, 1, T_src), jnp.float32)

    out, attn = decoder_forward(params, trg, enc_src, trg_mask, src_mask,
                                n_heads=n_heads, hid_dim=hid_dim)
    jax.block_until_ready(out)
    jax.block_until_ready(attn)

    assert out.shape == (B, T_trg, output_dim)
    assert attn.shape == (B, n_heads, T_trg, T_src)
    print("KERNEL_OK")
</pallas_src>

<mosaic_0001>
module attributes {stable_mosaic.version = 11 : i64} {
  func.func @_linear_kernel(%arg0: i32, %arg1: i32, %arg2: memref<16x128xbf16, #tpu.memory_space<vmem>>, %arg3: memref<128x384xbf16, #tpu.memory_space<vmem>>, %arg4: memref<1x384xf32, #tpu.memory_space<vmem>>, %arg5: memref<16x384xbf16, #tpu.memory_space<vmem>>) attributes {dimension_semantics = [#tpu.dimension_semantics<parallel>, #tpu.dimension_semantics<parallel>], iteration_bounds = array<i64: 1, 1>, scalar_prefetch = 0 : i64, scratch_operands = 0 : i64, tpu.core_type = #tpu.core_type<tc>, window_params = [{transform_indices = @transform_0, window_bounds = array<i64: 16, 128>}, {pipeline_mode = #tpu.pipeline_mode<synchronous>, transform_indices = @transform_1, window_bounds = array<i64: 128, 384>}, {pipeline_mode = #tpu.pipeline_mode<synchronous>, transform_indices = @transform_2, window_bounds = array<i64: 1, 384>}, {transform_indices = @transform_3, window_bounds = array<i64: 16, 384>}]} {
    %c0 = arith.constant 0 : index
    %c0_0 = arith.constant 0 : index
    %0 = vector.load %arg2[%c0, %c0_0] : memref<16x128xbf16, #tpu.memory_space<vmem>>, vector<16x128xbf16>
    %c0_1 = arith.constant 0 : index
    %c0_2 = arith.constant 0 : index
    %1 = vector.load %arg3[%c0_1, %c0_2] : memref<128x384xbf16, #tpu.memory_space<vmem>>, vector<128x384xbf16>
    %cst = arith.constant dense<0.000000e+00> : vector<16x384xf32>
    %2 = tpu.matmul %0, %1, %cst {dimension_numbers = #tpu.dot_dimension_numbers<[1], [0], [0], [1], [0, 0, 1, 1], [], []>} : vector<16x128xbf16>, vector<128x384xbf16>, vector<16x384xf32> -> vector<16x384xf32>
    %c0_3 = arith.constant 0 : index
    %c0_4 = arith.constant 0 : index
    %3 = vector.load %arg4[%c0_3, %c0_4] : memref<1x384xf32, #tpu.memory_space<vmem>>, vector<1x384xf32>
    %4 = vector.broadcast %3 : vector<1x384xf32> to vector<16x384xf32>
    %5 = arith.addf %2, %4 : vector<16x384xf32>
    %6 = arith.truncf %5 : vector<16x384xf32> to vector<16x384xbf16>
    %c0_5 = arith.constant 0 : index
    %c0_6 = arith.constant 0 : index
    %7 = vector.load %arg5[%c0_5, %c0_6] : memref<16x384xbf16, #tpu.memory_space<vmem>>, vector<16x384xbf16>
    tpu.vector_store %arg5[%c0_5, %c0_6], %6 {strides = array<i32>} : memref<16x384xbf16, #tpu.memory_space<vmem>>, vector<16x384xbf16>,
    return
  }
  func.func @transform_0(%arg0: i32, %arg1: i32) -> (i32, i32) {
    %c0_i32 = arith.constant 0 : i32
    %c0_i32_0 = arith.constant 0 : i32
    return %arg0, %c0_i32 : i32, i32
  }
  func.func @transform_1(%arg0: i32, %arg1: i32) -> (i32, i32) {
    %c0_i32 = arith.constant 0 : i32
    %c0_i32_0 = arith.constant 0 : i32
    %c0_i32_1 = arith.constant 0 : i32
    return %c0_i32, %c0_i32_0 : i32, i32
  }
  func.func @transform_2(%arg0: i32, %arg1: i32) -> (i32, i32) {
    %c0_i32 = arith.constant 0 : i32
    %c0_i32_0 = arith.constant 0 : i32
    %c0_i32_1 = arith.constant 0 : i32
    return %c0_i32, %c0_i32_0 : i32, i32
  }
  func.func @transform_3(%arg0: i32, %arg1: i32) -> (i32, i32) {
    %c0_i32 = arith.constant 0 : i32
    return %arg0, %arg1 : i32, i32
  }
}

</mosaic_0001>

<llo_original>
// kernel: tpu_custom_call.1
$region0: #{tpu_custom_call.1}
  #allocation0 [shape = 'u32[]', space=smem, size = 0x4, offset = 0x4, fixed_abs, tag = 'smem constant byte address 0x4 - core index']
  #allocation1 [shape = 'u32[144,128]{1,0:T(1,128)}', space=vmem, size = 0x12000, scoped, tag = 'internal scratch']
  %s0 = inlined_call_operand.hbm [shape: bf16[16,128], index: 0, kind: input, shape index: {}]
  %s1 = inlined_call_operand.hbm [shape: bf16[128,384], index: 1, kind: input, shape index: {}]
  %s2 = inlined_call_operand.vmem [shape: f32[1,384], index: 2, kind: input, shape index: {}]
  %s3 = inlined_call_operand.hbm [shape: bf16[16,384], index: 3, kind: output, shape index: {}]
  %s4 = sld [smem:[#allocation0]]
  $region30: #{tpu_custom_call.1} parent=0
    _
  %s6 = ssub.s32 1, %s4
  %s7 = scalar_select 0, %s6, %s4
  $region1: #{tpu_custom_call.1} parent=0
    #allocation2 [shape = 'u8[4096]{0}', space=vmem, size = 0x1000, scoped, tag = 'input window, operand 0, single buffered']
    #allocation3 [shape = 's32[1]{0}', space=sflag, size = 0x4, scoped, tag = 'scoped memory for tpu_custom_call.1']
    #allocation4 [shape = 's32[1]{0}', space=sflag, size = 0x4, scoped, tag = 'scoped memory for tpu_custom_call.1']
    #allocation5 [shape = 'u8[98304]{0}', space=vmem, size = 0x18000, scoped, tag = 'input window, operand 1, single buffered']
    #allocation6 [shape = 's32[1]{0}', space=sflag, size = 0x4, scoped, tag = 'scoped memory for tpu_custom_call.1']
    #allocation7 [shape = 'u8[12288]{0}', space=vmem, size = 0x3000, scoped, tag = 'output window, operand 0, single buffered']
    %8 = vsyncpa [#allocation3], 0
    %9 = vsyncpa [#allocation6], 0
    %10 = vsyncpa [#allocation4], 0
    // Predicated region
    $region2: #{tpu_custom_call.1} parent=1 // pred_check
      _
    $region3: #{tpu_custom_call.1} parent=1 // pred_check_branch
      %12 = sbr.rel (0) target = $region5
    $region4: #{tpu_custom_call.1} parent=1 // pred_region
      %s14 = ssub.s32 128, 128
      %15 = vsyncadd [#allocation3], %s14
      %s16 = sshll.u32 [#allocation2], 4
      %s17 = int_to_ptr.vmem [resolvable:$true] %s16
      %22 = dma.hbm_to_vmem [thread:$0]  %s0, 128, %s17, [#allocation3], 64, 64, 4
    $region5: #{tpu_custom_call.1} parent=1 // pred_fallthru
      _
    // Predicated region
    $region6: #{tpu_custom_call.1} parent=1 // pred_check
      _
    $region7: #{tpu_custom_call.1} parent=1 // pred_check_branch
      %24 = sbr.rel (0) target = $region9
    $region8: #{tpu_custom_call.1} parent=1 // pred_region
      %s26 = ssub.s32 3072, 3072
      %27 = vsyncadd [#allocation6], %s26
      %s28 = sshll.u32 [#allocation5], 4
      %s29 = int_to_ptr.vmem [resolvable:$true] %s28
      %34 = dma.hbm_to_vmem [thread:$0]  %s1, 3072, %s29, [#allocation6], 192, 192, 12
    $region9: #{tpu_custom_call.1} parent=1 // pred_fallthru
      _
    // Predicated region
    $region10: #{tpu_custom_call.1} parent=1 // pred_check
      _
    $region11: #{tpu_custom_call.1} parent=1 // pred_check_branch
      %36 = sbr.rel (0) target = $region13
    $region12: #{tpu_custom_call.1} parent=1 // pred_region
      _
    $region13: #{tpu_custom_call.1} parent=1 // pred_fallthru
      _
    // Predicated region
    $region14: #{tpu_custom_call.1} parent=1 // pred_check
      _
    $region15: #{tpu_custom_call.1} parent=1 // pred_check_branch
      %38 = sbr.rel (0) target = $region17
    $region16: #{tpu_custom_call.1} parent=1 // pred_region
      %39 = dma.done [#allocation3], 128
    $region17: #{tpu_custom_call.1} parent=1 // pred_fallthru
      _
    // Predicated region
    $region18: #{tpu_custom_call.1} parent=1 // pred_check
      _
    $region19: #{tpu_custom_call.1} parent=1 // pred_check_branch
      %41 = sbr.rel (0) target = $region21
    $region20: #{tpu_custom_call.1} parent=1 // pred_region
      %42 = dma.done [#allocation6], 3072
    $region21: #{tpu_custom_call.1} parent=1 // pred_fallthru
      _
    %v44 = vld [vmem:[#allocation2] sm:$0xf]
    %v45 = vld [vmem:[#allocation2 + $0x4] sm:$0xf]
    %v46 = vld [vmem:[#allocation5] sm:$0xff]
    %v47 = vld [vmem:[#allocation5 + $0x8] sm:$0xf]
    %v48 = vld [vmem:[#allocation5 + $0xc] sm:$0xff]
    %v49 = vld [vmem:[#allocation5 + $0x14] sm:$0xf]
    %v50 = vld [vmem:[#allocation5 + $0x18] sm:$0xff]
    %v51 = vld [vmem:[#allocation5 + $0x20] sm:$0xf]
    %v52 = vld [vmem:[#allocation5 + $0x24] sm:$0xff]
    %v53 = vld [vmem:[#allocation5 + $0x2c] sm:$0xf]
    %v54 = vld [vmem:[#allocation5 + $0x30] sm:$0xff]
    %v55 = vld [vmem:[#allocation5 + $0x38] sm:$0xf]
    %v56 = vld [vmem:[#allocation5 + $0x3c] sm:$0xff]
    %v57 = vld [vmem:[#allocation5 + $0x44] sm:$0xf]
    %v58 = vld [vmem:[#allocation5 + $0x48] sm:$0xff]
    %v59 = vld [vmem:[#allocation5 + $0x50] sm:$0xf]
    %v60 = vld [vmem:[#allocation5 + $0x54] sm:$0xff]
    %v61 = vld [vmem:[#allocation5 + $0x5c] sm:$0xf]
    %v62 = vld [vmem:[#allocation5 + $0x60] sm:$0xff]
    %v63 = vld [vmem:[#allocation5 + $0x68] sm:$0xf]
    %v64 = vld [vmem:[#allocation5 + $0x6c] sm:$0xff]
    %v65 = vld [vmem:[#allocation5 + $0x74] sm:$0xf]
    %v66 = vld [vmem:[#allocation5 + $0x78] sm:$0xff]
    %v67 = vld [vmem:[#allocation5 + $0x80] sm:$0xf]
    %v68 = vld [vmem:[#allocation5 + $0x84] sm:$0xff]
    %v69 = vld [vmem:[#allocation5 + $0x8c] sm:$0xf]
    %v70 = vld [vmem:[#allocation5 + $0x90] sm:$0xff]
    %v71 = vld [vmem:[#allocation5 + $0x98] sm:$0xf]
    %v72 = vld [vmem:[#allocation5 + $0x9c] sm:$0xff]
    %v73 = vld [vmem:[#allocation5 + $0xa4] sm:$0xf]
    %v74 = vld [vmem:[#allocation5 + $0xa8] sm:$0xff]
    %v75 = vld [vmem:[#allocation5 + $0xb0] sm:$0xf]
    %v76 = vld [vmem:[#allocation5 + $0xb4] sm:$0xff]
    %v77 = vld [vmem:[#allocation5 + $0xbc] sm:$0xf]
    %v78 = vld [vmem:[%s2] sm:$0x7]
    %v80 = vlaneseq
    %v81 = vshrl.u32 %v80, 7
    %v82 = vsub.s32 0, %v81
    %v83 = vrot.slane %v78, %v82
    %v84 = vlaneseq
    %v85 = vshrl.u32 %v84, 7
    %v86 = vsub.s32 1, %v85
    %v87 = vrot.slane %v78, %v86
    %v88 = vlaneseq
    %v89 = vshrl.u32 %v88, 7
    %v90 = vsub.s32 2, %v89
    %v91 = vrot.slane %v78, %v90
    %v97 = vunpack.c.l.b16 %v44
    %v98 = vunpack.c.l.b16 %v45
    %v99 = vpack.c.b16 %v98, %v97
    %v133 = vunpack.c.l.b16 %v46
    %v134 = vunpack.c.h.b16 %v46
    %v135 = vunpack.c.l.b16 %v47
    %v136 = vunpack.c.l.b16 %v48
    %v137 = vunpack.c.h.b16 %v48
    %v138 = vunpack.c.l.b16 %v49
    %v139 = vunpack.c.l.b16 %v50
    %v140 = vunpack.c.h.b16 %v50
    %v141 = vunpack.c.l.b16 %v51
    %v142 = vunpack.c.l.b16 %v52
    %v143 = vunpack.c.h.b16 %v52
    %v144 = vunpack.c.l.b16 %v53
    %v145 = vunpack.c.l.b16 %v54
    %v146 = vunpack.c.h.b16 %v54
    %v147 = vunpack.c.l.b16 %v55
    %v148 = vunpack.c.l.b16 %v56
    %v149 = vunpack.c.h.b16 %v56
    %v150 = vunpack.c.l.b16 %v57
    %v151 = vunpack.c.l.b16 %v58
    %v152 = vunpack.c.h.b16 %v58
    %v153 = vunpack.c.l.b16 %v59
    %v154 = vunpack.c.l.b16 %v60
    %v155 = vunpack.c.h.b16 %v60
    %v156 = vunpack.c.l.b16 %v61
    %v157 = vunpack.c.l.b16 %v62
    %v158 = vunpack.c.h.b16 %v62
    %v159 = vunpack.c.l.b16 %v63
    %v160 = vunpack.c.l.b16 %v64
    %v161 = vunpack.c.h.b16 %v64
    %v162 = vunpack.c.l.b16 %v65
    %v163 = vunpack.c.l.b16 %v66
    %v164 = vunpack.c.h.b16 %v66
    %v165 = vunpack.c.l.b16 %v67
    %v166 = vunpack.c.l.b16 %v68
    %v167 = vunpack.c.h.b16 %v68
    %v168 = vunpack.c.l.b16 %v69
    %v169 = vunpack.c.l.b16 %v70
    %v170 = vunpack.c.h.b16 %v70
    %v171 = vunpack.c.l.b16 %v71
    %v172 = vunpack.c.l.b16 %v72
    %v173 = vunpack.c.h.b16 %v72
    %v174 = vunpack.c.l.b16 %v73
    %v175 = vunpack.c.l.b16 %v74
    %v176 = vunpack.c.h.b16 %v74
    %v177 = vunpack.c.l.b16 %v75
    %v178 = vunpack.c.l.b16 %v76
    %v179 = vunpack.c.h.b16 %v76
    %v180 = vunpack.c.l.b16 %v77
    %v181 = vpack.c.b16 %v136, %v133
    %v182 = vpack.c.b16 %v137, %v134
    %v183 = vpack.c.b16 %v138, %v135
    %v184 = vpack.c.b16 %v142, %v139
    %v185 = vpack.c.b16 %v143, %v140
    %v186 = vpack.c.b16 %v144, %v141
    %v187 = vpack.c.b16 %v148, %v145
    %v188 = vpack.c.b16 %v149, %v146
    %v189 = vpack.c.b16 %v150, %v147
    %v190 = vpack.c.b16 %v154, %v151
    %v191 = vpack.c.b16 %v155, %v152
    %v192 = vpack.c.b16 %v156, %v153
    %v193 = vpack.c.b16 %v160, %v157
    %v194 = vpack.c.b16 %v161, %v158
    %v195 = vpack.c.b16 %v162, %v159
    %v196 = vpack.c.b16 %v166, %v163
    %v197 = vpack.c.b16 %v167, %v164
    %v198 = vpack.c.b16 %v168, %v165
    %v199 = vpack.c.b16 %v172, %v169
    %v200 = vpack.c.b16 %v173, %v170
    %v201 = vpack.c.b16 %v174, %v171
    %v202 = vpack.c.b16 %v178, %v175
    %v203 = vpack.c.b16 %v179, %v176
    %v204 = vpack.c.b16 %v180, %v177
    %229 = vmatprep.subr.bf16.mxu0 %v203
    %230 = vmatpush1.bf16.msra.mxu0 %v202
    %231 = vmatprep.subr.bf16.mxu0 %v200
    %232 = vmatpush1.bf16.msra.mxu0 %v199
    %233 = vmatprep.subr.bf16.mxu0 %v197
    %234 = vmatpush1.bf16.msra.mxu0 %v196
    %235 = vmatprep.subr.bf16.mxu0 %v194
    %236 = vmatpush1.bf16.msra.mxu0 %v193
    %237 = vmatprep.subr.bf16.mxu0 %v191
    %238 = vmatpush1.bf16.msra.mxu0 %v190
    %239 = vmatprep.subr.bf16.mxu0 %v188
    %240 = vmatpush1.bf16.msra.mxu0 %v187
    %241 = vmatprep.subr.bf16.mxu0 %v185
    %242 = vmatpush1.bf16.msra.mxu0 %v184
    %243 = vmatprep.subr.bf16.mxu0 %v182
    %244 = vmatpush1.bf16.msra.mxu0 %v181
    %245 = vmatprep.subr.bf16.mxu0 0
    %246 = vmatpush2.bf16.msra.mxu0 0
    %247 = vmatprep.subr.bf16.mxu0 0
    %248 = vmatpush2.bf16.msra.mxu0 0
    %249 = vmatprep.subr.bf16.mxu0 0
    %250 = vmatpush2.bf16.msra.mxu0 0
    %251 = vmatprep.subr.bf16.mxu0 0
    %252 = vmatpush2.bf16.msra.mxu0 0
    %253 = vmatprep.subr.bf16.mxu0 0
    %254 = vmatpush2.bf16.msra.mxu0 0
    %255 = vmatprep.subr.bf16.mxu0 0
    %256 = vmatpush2.bf16.msra.mxu0 0
    %257 = vmatprep.subr.bf16.mxu0 0
    %258 = vmatpush2.bf16.msra.mxu0 0
    %259 = vmatprep.subr.bf16.mxu0 0
    %260 = vmatpush2.bf16.msra.mxu0 0
    %261 = vmatprep.mubr.bf16.mxu0 0
    %262 = vmatmul.mubr.bf16.gmra.mxu0 %v99
    %v263 = vpop.f32.mrf.mxu0
    %v264 = vadd.f32 %v83, %v263
    %v265 = vpop.f32.mrf.mxu0
    %v266 = vadd.f32 %v87, %v265
    %v267 = vpop.f32.mrf.mxu0
    %v268 = vadd.f32 %v83, %v267
    %v269 = vpop.f32.mrf.mxu0
    %v270 = vadd.f32 %v87, %v269
    %271 = vdwg.mxu0
    %272 = vmatprep.subr.bf16.mxu0 0
    %273 = vmatpush1.bf16.msra.mxu0 %v204
    %274 = vmatprep.subr.bf16.mxu0 0
    %275 = vmatpush1.bf16.msra.mxu0 %v201
    %276 = vmatprep.subr.bf16.mxu0 0
    %277 = vmatpush1.bf16.msra.mxu0 %v198
    %278 = vmatprep.subr.bf16.mxu0 0
    %279 = vmatpush1.bf16.msra.mxu0 %v195
    %280 = vmatprep.subr.bf16.mxu0 0
    %281 = vmatpush1.bf16.msra.mxu0 %v192
    %282 = vmatprep.subr.bf16.mxu0 0
    %283 = vmatpush1.bf16.msra.mxu0 %v189
    %284 = vmatprep.subr.bf16.mxu0 0
    %285 = vmatpush1.bf16.msra.mxu0 %v186
    %286 = vmatprep.subr.bf16.mxu0 0
    %287 = vmatpush1.bf16.msra.mxu0 %v183
    %288 = vmatprep.subr.bf16.mxu0 0
    %289 = vmatpush2.bf16.msra.mxu0 0
    %290 = vmatprep.subr.bf16.mxu0 0
    %291 = vmatpush2.bf16.msra.mxu0 0
    %292 = vmatprep.subr.bf16.mxu0 0
    %293 = vmatpush2.bf16.msra.mxu0 0
    %294 = vmatprep.subr.bf16.mxu0 0
    %295 = vmatpush2.bf16.msra.mxu0 0
    %296 = vmatprep.subr.bf16.mxu0 0
    %297 = vmatpush2.bf16.msra.mxu0 0
    %298 = vmatprep.subr.bf16.mxu0 0
    %299 = vmatpush2.bf16.msra.mxu0 0
    %300 = vmatprep.subr.bf16.mxu0 0
    %301 = vmatpush2.bf16.msra.mxu0 0
    %302 = vmatprep.subr.bf16.mxu0 0
    %303 = vmatpush2.bf16.msra.mxu0 0
    %304 = vmatprep.mubr.bf16.mxu0 0
    %305 = vmatmul.mubr.bf16.gmra.mxu0 %v99
    %v306 = vpop.f32.mrf.mxu0
    %v307 = vadd.f32 %v91, %v306
    %v308 = vpop.f32.mrf.mxu0
    %v309 = vpop.f32.mrf.mxu0
    %v310 = vadd.f32 %v91, %v309
    %v311 = vpop.f32.mrf.mxu0
    %312 = vdwg.mxu0
    %v313 = vpack.c.bf16 %v268, %v264
    %v314 = vpack.c.bf16 %v270, %v266
    %v315 = vpack.c.bf16 %v310, %v307
    %v319 = vunpack.c.l.b16 %v313
    %v320 = vunpack.c.l.b16 %v314
    %v321 = vunpack.c.l.b16 %v315
    %v322 = vunpack.c.h.b16 %v313
    %v323 = vunpack.c.h.b16 %v314
    %v324 = vunpack.c.h.b16 %v315
    %v325 = vpack.c.b16 %v320, %v319
    %v326 = vpack.c.b16 %v321, %v321
    %v327 = vpack.c.b16 %v323, %v322
    %v328 = vpack.c.b16 %v324, %v324
    %333 = vst [vmem:[#allocation7] sm:$0xff] %v325
    %334 = vst [vmem:[#allocation7 + $0x8] sm:$0xf] %v326
    %335 = vst [vmem:[#allocation7 + $0xc] sm:$0xff] %v327
    %336 = vst [vmem:[#allocation7 + $0x14] sm:$0xf] %v328
    // Predicated region
    $region22: #{tpu_custom_call.1} parent=1 // pred_check
      _
    $region23: #{tpu_custom_call.1} parent=1 // pred_check_branch
      %338 = sbr.rel (0) target = $region25
    $region24: #{tpu_custom_call.1} parent=1 // pred_region
      %s340 = ssub.s32 384, 384
      %341 = vsyncadd [#allocation4], %s340
      %s342 = sshll.u32 [#allocation7], 4
      %s343 = int_to_ptr.vmem [resolvable:$true] %s342
      %348 = dma.vmem_to_hbm [thread:$0]  %s343, 384, %s3, [#allocation4], 192, 192, 12
    $region25: #{tpu_custom_call.1} parent=1 // pred_fallthru
      _
    // Predicated region
    $region26: #{tpu_custom_call.1} parent=1 // pred_check
      _
    $region27: #{tpu_custom_call.1} parent=1 // pred_check_branch
      %350 = sbr.rel (0) target = $region29
    $region28: #{tpu_custom_call.1} parent=1 // pred_region
      %351 = dma.done [#allocation4], 384
    $region29: #{tpu_custom_call.1} parent=1 // pred_fallthru
      _
    %352 = vsyncpa [#allocation3], 1
    %353 = vsyncpa [#allocation6], 1
    %354 = vsyncpa [#allocation4], 1

</llo_original>
